<compile_context>
chip_gen: v5e
topology: v5e:2x2
jax: 0.10.0
libtpu: 0.0.40
codegen_flags: <defaults>
</compile_context>

<pallas_src>
import jax
import jax.numpy as jnp
import numpy as np
from jax.experimental import pallas as pl
from jax.experimental.pallas import tpu as pltpu


def _round_up(x, m):
    return ((x + m - 1) // m) * m


def _make_rnn_fc_kernel(n_layers: int, B_pad: int, T: int, H_pad: int,
                        O_pad: int):
    """Build a kernel closed over static sizes (loops unrolled at trace time)."""

    def kernel(x_ref, *refs):
        # refs layout:
        #   [3*l + 0] : w_ih_l^T padded   (D_pad or H_pad, H_pad)
        #   [3*l + 1] : w_hh_l^T padded   (H_pad, H_pad)
        #   [3*l + 2] : b_ih_l + b_hh_l   (1, H_pad)
        #   [3*L + 0] : w_fc^T padded     (H_pad, O_pad)
        #   [3*L + 1] : b_fc padded       (1, O_pad)
        #   [3*L + 2] : out               (T*B_pad, O_pad)   [output, time-major]
        #   [3*L + 3] : hidden            (L*B_pad, H_pad)   [output]
        #   [3*L + 4] : x2 scratch        (T*B_pad, H_pad)   [VMEM, time-major]
        layer_refs = refs[: 3 * n_layers]
        w_fc_ref = refs[3 * n_layers + 0]
        b_fc_ref = refs[3 * n_layers + 1]
        out_ref = refs[3 * n_layers + 2]
        hid_ref = refs[3 * n_layers + 3]
        x2_ref = refs[3 * n_layers + 4]

        for l in range(n_layers):
            w_ih_t = layer_refs[3 * l + 0][...]
            w_hh_t = layer_refs[3 * l + 1][...]
            bias = layer_refs[3 * l + 2][...]            # (1, H_pad)

            # --- Hoisted input projection: one matmul per layer -------------
            # Layer 0 reads the pre-flattened, lane-padded time-major input;
            # layers >0 read the previous layer's activations (same slab).
            src = x_ref[...] if l == 0 else x2_ref[...]
            x2_ref[...] = (
                jnp.dot(src, w_ih_t, preferred_element_type=jnp.float32)
                + bias
            )

            # --- Serial recurrence ------------------------------------------
            # t = 0 peeled: hidden0 is zeros, so the W_hh matmul is dead work.
            h = jnp.tanh(x2_ref[pl.ds(0, B_pad), :])
            x2_ref[pl.ds(0, B_pad), :] = h
            for t in range(1, T):
                # Each slice is an exact (8k, 128) vreg tile (B_pad multiple of 8).
                pre = x2_ref[pl.ds(t * B_pad, B_pad), :] + jnp.dot(
                    h, w_hh_t, preferred_element_type=jnp.float32
                )
                h = jnp.tanh(pre)
                x2_ref[pl.ds(t * B_pad, B_pad), :] = h   # overwrite consumed row
            hid_ref[pl.ds(l * B_pad, B_pad), :] = h      # final hidden, layer l

        # --- FC head on the time-major activation slab ----------------------
        logits = (
            jnp.dot(x2_ref[...], w_fc_ref[...],
                    preferred_element_type=jnp.float32)
            + b_fc_ref[...]
        )                                                # (T*B_pad, O_pad)
        out_ref[...] = jnp.tanh(logits)                  # lane-dense store

    return kernel


def prepare_params(params, n_layers, state_dim, hidden_size, output_size):
    """One-time parameter prep: transpose, pad to 128-lane tiles, fuse biases."""
    H, O = hidden_size, output_size
    H_pad, O_pad = _round_up(H, 128), _round_up(O, 128)
    D_pad = _round_up(state_dim, 128)
    prepped = []
    for l in range(n_layers):
        w_ih_t = params["w_ih"][l].T                     # (in_dim, H)
        in_dim = w_ih_t.shape[0]
        in_pad = D_pad if l == 0 else H_pad
        prepped.append(jnp.pad(w_ih_t, ((0, in_pad - in_dim), (0, H_pad - H))))
        prepped.append(jnp.pad(params["w_hh"][l].T,
                               ((0, H_pad - H), (0, H_pad - H))))
        bias = (params["b_ih"][l] + params["b_hh"][l]).reshape(1, H)
        prepped.append(jnp.pad(bias, ((0, 0), (0, H_pad - H))))
    prepped.append(jnp.pad(params["w_fc"].T, ((0, H_pad - H), (0, O_pad - O))))
    prepped.append(jnp.pad(params["b_fc"].reshape(1, O), ((0, 0), (0, O_pad - O))))
    return tuple(prepped), H_pad, O_pad, D_pad


def conv_network_forward(state, prepped, n_layers, hidden_size, output_size,
                         H_pad, O_pad, D_pad):
    """Hot path: single pallas_call (whole problem resident in VMEM)."""
    B, T, D = state.shape
    B_pad = _round_up(B, 8)

    # Wrapper-side layout plumbing (tiny arrays; free relative to the kernel):
    # time-major, batch padded to a full sublane group, lanes padded to 128.
    x_tm = jnp.transpose(state, (1, 0, 2))               # (T, B, D)
    x_tm = jnp.pad(x_tm, ((0, 0), (0, B_pad - B), (0, D_pad - D)))
    x_flat = x_tm.reshape(T * B_pad, D_pad)              # (T*B_pad, D_pad)

    # VMEM footprint of the resident design (input + params + outputs + scratch).
    f32 = 4
    footprint = (
        T * B_pad * D_pad * f32
        + sum(int(np.prod(p.shape)) * f32 for p in prepped)
        + T * B_pad * O_pad * f32
        + n_layers * B_pad * H_pad * f32
        + T * B_pad * H_pad * f32
    )
    # Keep well under v7x's 64 MiB physical VMEM (32 MiB scoped default).
    assert footprint <= 48 * 1024 * 1024, (
        f"resident VMEM footprint {footprint} B too large; tile over T "
        f"(see TODO in _make_rnn_fc_kernel)")
    vmem_limit = int(max(2 * footprint, 16 * 1024 * 1024))

    vmem = pl.BlockSpec(memory_space=pltpu.MemorySpace.VMEM)
    kernel = _make_rnn_fc_kernel(n_layers, B_pad, T, H_pad, O_pad)

    out_tm, hid_pad = pl.pallas_call(
        kernel,
        out_shape=(
            jax.ShapeDtypeStruct((T * B_pad, O_pad), jnp.float32),
            jax.ShapeDtypeStruct((n_layers * B_pad, H_pad), jnp.float32),
        ),
        in_specs=[vmem] * (1 + len(prepped)),
        out_specs=(vmem, vmem),
        scratch_shapes=[
            pltpu.VMEM((T * B_pad, H_pad), jnp.float32),  # proj/activation slab
        ],
        compiler_params=pltpu.CompilerParams(vmem_limit_bytes=vmem_limit),
    )(x_flat, *prepped)

    # Un-pad and reorder to PyTorch's out.view(-1, H) row order (b*T + t).
    out = jnp.transpose(
        out_tm.reshape(T, B_pad, O_pad)[:, :B, :output_size], (1, 0, 2)
    ).reshape(B * T, output_size)
    hidden = hid_pad.reshape(n_layers, B_pad, H_pad)[:, :B, :hidden_size]
    return out, hidden


def _reference_forward(state, params, n_layers):
    """Pure-JAX reference (mirrors torch.nn.RNN + Linear) for validation."""
    B, T, _ = state.shape
    H = params["w_hh"][0].shape[0]
    x_seq = state
    hiddens = []
    for l in range(n_layers):
        w_ih, w_hh = params["w_ih"][l], params["w_hh"][l]
        b_ih, b_hh = params["b_ih"][l], params["b_hh"][l]
        h = jnp.zeros((B, H), jnp.float32)
        outs = []
        for t in range(T):
            h = jnp.tanh(x_seq[:, t, :] @ w_ih.T + b_ih + h @ w_hh.T + b_hh)
            outs.append(h)
        x_seq = jnp.stack(outs, axis=1)
        hiddens.append(h)
    hidden = jnp.stack(hiddens, axis=0)
    flat = x_seq.reshape(B * T, H)
    out = jnp.tanh(flat @ params["w_fc"].T + params["b_fc"])
    return out, hidden


def init_params(key, state_dim, hidden_size, n_layers, output_size):
    """uniform(-1/sqrt(H), 1/sqrt(H)) init, like PyTorch defaults."""
    bound = 1.0 / np.sqrt(hidden_size)
    params = {"w_ih": [], "w_hh": [], "b_ih": [], "b_hh": []}
    for l in range(n_layers):
        in_dim = state_dim if l == 0 else hidden_size
        key, k1, k2, k3, k4 = jax.random.split(key, 5)
        params["w_ih"].append(
            jax.random.uniform(k1, (hidden_size, in_dim), jnp.float32, -bound, bound))
        params["w_hh"].append(
            jax.random.uniform(k2, (hidden_size, hidden_size), jnp.float32, -bound, bound))
        params["b_ih"].append(
            jax.random.uniform(k3, (hidden_size,), jnp.float32, -bound, bound))
        params["b_hh"].append(
            jax.random.uniform(k4, (hidden_size,), jnp.float32, -bound, bound))
    key, k5, k6 = jax.random.split(key, 3)
    params["w_fc"] = jax.random.uniform(
        k5, (output_size, hidden_size), jnp.float32, -bound, bound)
    params["b_fc"] = jax.random.uniform(
        k6, (output_size,), jnp.float32, -bound, bound)
    return params


if __name__ == "__main__":
    batch, seq, state_dim = 2, 8, 8
    hidden_size, n_layers, output_size = 32, 2, 4

    key = jax.random.PRNGKey(0)
    key, kx = jax.random.split(key)
    state = jax.random.normal(kx, (batch, seq, state_dim), dtype=jnp.float32)
    params = init_params(key, state_dim, hidden_size, n_layers, output_size)

    # One-time prep (weight transpose + lane padding + bias fusion).
    prepped, H_pad, O_pad, D_pad = prepare_params(
        params, n_layers, state_dim, hidden_size, output_size)
    prepped = jax.block_until_ready(prepped)

    out, hidden = conv_network_forward(state, prepped, n_layers,
                                       hidden_size, output_size,
                                       H_pad, O_pad, D_pad)
    out = jax.block_until_ready(out)
    hidden = jax.block_until_ready(hidden)

    ref_out, ref_hidden = _reference_forward(state, params, n_layers)
    np.testing.assert_allclose(np.asarray(out), np.asarray(ref_out),
                               rtol=2e-5, atol=2e-5)
    np.testing.assert_allclose(np.asarray(hidden), np.asarray(ref_hidden),
                               rtol=2e-5, atol=2e-5)

    assert out.shape == (batch * seq, output_size)
    assert hidden.shape == (n_layers, batch, hidden_size)

    print("KERNEL_OK")
</pallas_src>

<mosaic_0001>
module attributes {stable_mosaic.version = 11 : i64} {
  func.func @kernel(%arg0: memref<64x128xf32, #tpu.memory_space<vmem>>, %arg1: memref<128x128xf32, #tpu.memory_space<vmem>>, %arg2: memref<128x128xf32, #tpu.memory_space<vmem>>, %arg3: memref<1x128xf32, #tpu.memory_space<vmem>>, %arg4: memref<128x128xf32, #tpu.memory_space<vmem>>, %arg5: memref<128x128xf32, #tpu.memory_space<vmem>>, %arg6: memref<1x128xf32, #tpu.memory_space<vmem>>, %arg7: memref<128x128xf32, #tpu.memory_space<vmem>>, %arg8: memref<1x128xf32, #tpu.memory_space<vmem>>, %arg9: memref<64x128xf32, #tpu.memory_space<vmem>>, %arg10: memref<16x128xf32, #tpu.memory_space<vmem>>, %arg11: memref<64x128xf32, #tpu.memory_space<vmem>>) attributes {dimension_semantics = [], scalar_prefetch = 0 : i64, scratch_operands = 1 : i64, tpu.core_type = #tpu.core_type<tc>} {
    %c0 = arith.constant 0 : index
    %c0_0 = arith.constant 0 : index
    %0 = vector.load %arg1[%c0, %c0_0] : memref<128x128xf32, #tpu.memory_space<vmem>>, vector<128x128xf32>
    %c0_1 = arith.constant 0 : index
    %c0_2 = arith.constant 0 : index
    %1 = vector.load %arg2[%c0_1, %c0_2] : memref<128x128xf32, #tpu.memory_space<vmem>>, vector<128x128xf32>
    %c0_3 = arith.constant 0 : index
    %c0_4 = arith.constant 0 : index
    %2 = vector.load %arg3[%c0_3, %c0_4] : memref<1x128xf32, #tpu.memory_space<vmem>>, vector<1x128xf32>
    %c0_5 = arith.constant 0 : index
    %c0_6 = arith.constant 0 : index
    %3 = vector.load %arg0[%c0_5, %c0_6] : memref<64x128xf32, #tpu.memory_space<vmem>>, vector<64x128xf32>
    %cst = arith.constant dense<0.000000e+00> : vector<64x128xf32>
    %4 = tpu.matmul %3, %0, %cst {dimension_numbers = #tpu.dot_dimension_numbers<[1], [0], [0], [1], [0, 0, 1, 1], [], []>} : vector<64x128xf32>, vector<128x128xf32>, vector<64x128xf32> -> vector<64x128xf32>
    %5 = vector.broadcast %2 : vector<1x128xf32> to vector<64x128xf32>
    %6 = arith.addf %4, %5 : vector<64x128xf32>
    %c0_7 = arith.constant 0 : index
    %c0_8 = arith.constant 0 : index
    %7 = vector.load %arg11[%c0_7, %c0_8] : memref<64x128xf32, #tpu.memory_space<vmem>>, vector<64x128xf32>
    tpu.vector_store %arg11[%c0_7, %c0_8], %6 {strides = array<i32>} : memref<64x128xf32, #tpu.memory_space<vmem>>, vector<64x128xf32>,
    %c0_9 = arith.constant 0 : index
    %c0_10 = arith.constant 0 : index
    %8 = vector.load %arg11[%c0_9, %c0_10] : memref<64x128xf32, #tpu.memory_space<vmem>>, vector<8x128xf32>
    %9 = math.tanh %8 : vector<8x128xf32>
    %c0_11 = arith.constant 0 : index
    %c0_12 = arith.constant 0 : index
    %10 = vector.load %arg11[%c0_11, %c0_12] : memref<64x128xf32, #tpu.memory_space<vmem>>, vector<8x128xf32>
    tpu.vector_store %arg11[%c0_11, %c0_12], %9 {strides = array<i32>} : memref<64x128xf32, #tpu.memory_space<vmem>>, vector<8x128xf32>,
    %c8 = arith.constant 8 : index
    %c0_13 = arith.constant 0 : index
    %11 = vector.load %arg11[%c8, %c0_13] : memref<64x128xf32, #tpu.memory_space<vmem>>, vector<8x128xf32>
    %cst_14 = arith.constant dense<0.000000e+00> : vector<8x128xf32>
    %12 = tpu.matmul %9, %1, %cst_14 {dimension_numbers = #tpu.dot_dimension_numbers<[1], [0], [0], [1], [0, 0, 1, 1], [], []>} : vector<8x128xf32>, vector<128x128xf32>, vector<8x128xf32> -> vector<8x128xf32>
    %13 = arith.addf %11, %12 : vector<8x128xf32>
    %14 = math.tanh %13 : vector<8x128xf32>
    %c8_15 = arith.constant 8 : index
    %c0_16 = arith.constant 0 : index
    %15 = vector.load %arg11[%c8_15, %c0_16] : memref<64x128xf32, #tpu.memory_space<vmem>>, vector<8x128xf32>
    tpu.vector_store %arg11[%c8_15, %c0_16], %14 {strides = array<i32>} : memref<64x128xf32, #tpu.memory_space<vmem>>, vector<8x128xf32>,
    %c16 = arith.constant 16 : index
    %c0_17 = arith.constant 0 : index
    %16 = vector.load %arg11[%c16, %c0_17] : memref<64x128xf32, #tpu.memory_space<vmem>>, vector<8x128xf32>
    %cst_18 = arith.constant dense<0.000000e+00> : vector<8x128xf32>
    %17 = tpu.matmul %14, %1, %cst_18 {dimension_numbers = #tpu.dot_dimension_numbers<[1], [0], [0], [1], [0, 0, 1, 1], [], []>} : vector<8x128xf32>, vector<128x128xf32>, vector<8x128xf32> -> vector<8x128xf32>
    %18 = arith.addf %16, %17 : vector<8x128xf32>
    %19 = math.tanh %18 : vector<8x128xf32>
    %c16_19 = arith.constant 16 : index
    %c0_20 = arith.constant 0 : index
    %20 = vector.load %arg11[%c16_19, %c0_20] : memref<64x128xf32, #tpu.memory_space<vmem>>, vector<8x128xf32>
    tpu.vector_store %arg11[%c16_19, %c0_20], %19 {strides = array<i32>} : memref<64x128xf32, #tpu.memory_space<vmem>>, vector<8x128xf32>,
    %c24 = arith.constant 24 : index
    %c0_21 = arith.constant 0 : index
    %21 = vector.load %arg11[%c24, %c0_21] : memref<64x128xf32, #tpu.memory_space<vmem>>, vector<8x128xf32>
    %cst_22 = arith.constant dense<0.000000e+00> : vector<8x128xf32>
    %22 = tpu.matmul %19, %1, %cst_22 {dimension_numbers = #tpu.dot_dimension_numbers<[1], [0], [0], [1], [0, 0, 1, 1], [], []>} : vector<8x128xf32>, vector<128x128xf32>, vector<8x128xf32> -> vector<8x128xf32>
    %23 = arith.addf %21, %22 : vector<8x128xf32>
    %24 = math.tanh %23 : vector<8x128xf32>
    %c24_23 = arith.constant 24 : index
    %c0_24 = arith.constant 0 : index
    %25 = vector.load %arg11[%c24_23, %c0_24] : memref<64x128xf32, #tpu.memory_space<vmem>>, vector<8x128xf32>
    tpu.vector_store %arg11[%c24_23, %c0_24], %24 {strides = array<i32>} : memref<64x128xf32, #tpu.memory_space<vmem>>, vector<8x128xf32>,
    %c32 = arith.constant 32 : index
    %c0_25 = arith.constant 0 : index
    %26 = vector.load %arg11[%c32, %c0_25] : memref<64x128xf32, #tpu.memory_space<vmem>>, vector<8x128xf32>
    %cst_26 = arith.constant dense<0.000000e+00> : vector<8x128xf32>
    %27 = tpu.matmul %24, %1, %cst_26 {dimension_numbers = #tpu.dot_dimension_numbers<[1], [0], [0], [1], [0, 0, 1, 1], [], []>} : vector<8x128xf32>, vector<128x128xf32>, vector<8x128xf32> -> vector<8x128xf32>
    %28 = arith.addf %26, %27 : vector<8x128xf32>
    %29 = math.tanh %28 : vector<8x128xf32>
    %c32_27 = arith.constant 32 : index
    %c0_28 = arith.constant 0 : index
    %30 = vector.load %arg11[%c32_27, %c0_28] : memref<64x128xf32, #tpu.memory_space<vmem>>, vector<8x128xf32>
    tpu.vector_store %arg11[%c32_27, %c0_28], %29 {strides = array<i32>} : memref<64x128xf32, #tpu.memory_space<vmem>>, vector<8x128xf32>,
    %c40 = arith.constant 40 : index
    %c0_29 = arith.constant 0 : index
    %31 = vector.load %arg11[%c40, %c0_29] : memref<64x128xf32, #tpu.memory_space<vmem>>, vector<8x128xf32>
    %cst_30 = arith.constant dense<0.000000e+00> : vector<8x128xf32>
    %32 = tpu.matmul %29, %1, %cst_30 {dimension_numbers = #tpu.dot_dimension_numbers<[1], [0], [0], [1], [0, 0, 1, 1], [], []>} : vector<8x128xf32>, vector<128x128xf32>, vector<8x128xf32> -> vector<8x128xf32>
    %33 = arith.addf %31, %32 : vector<8x128xf32>
    %34 = math.tanh %33 : vector<8x128xf32>
    %c40_31 = arith.constant 40 : index
    %c0_32 = arith.constant 0 : index
    %35 = vector.load %arg11[%c40_31, %c0_32] : memref<64x128xf32, #tpu.memory_space<vmem>>, vector<8x128xf32>
    tpu.vector_store %arg11[%c40_31, %c0_32], %34 {strides = array<i32>} : memref<64x128xf32, #tpu.memory_space<vmem>>, vector<8x128xf32>,
    %c48 = arith.constant 48 : index
    %c0_33 = arith.constant 0 : index
    %36 = vector.load %arg11[%c48, %c0_33] : memref<64x128xf32, #tpu.memory_space<vmem>>, vector<8x128xf32>
    %cst_34 = arith.constant dense<0.000000e+00> : vector<8x128xf32>
    %37 = tpu.matmul %34, %1, %cst_34 {dimension_numbers = #tpu.dot_dimension_numbers<[1], [0], [0], [1], [0, 0, 1, 1], [], []>} : vector<8x128xf32>, vector<128x128xf32>, vector<8x128xf32> -> vector<8x128xf32>
    %38 = arith.addf %36, %37 : vector<8x128xf32>
    %39 = math.tanh %38 : vector<8x128xf32>
    %c48_35 = arith.constant 48 : index
    %c0_36 = arith.constant 0 : index
    %40 = vector.load %arg11[%c48_35, %c0_36] : memref<64x128xf32, #tpu.memory_space<vmem>>, vector<8x128xf32>
    tpu.vector_store %arg11[%c48_35, %c0_36], %39 {strides = array<i32>} : memref<64x128xf32, #tpu.memory_space<vmem>>, vector<8x128xf32>,
    %c56 = arith.constant 56 : index
    %c0_37 = arith.constant 0 : index
    %41 = vector.load %arg11[%c56, %c0_37] : memref<64x128xf32, #tpu.memory_space<vmem>>, vector<8x128xf32>
    %cst_38 = arith.constant dense<0.000000e+00> : vector<8x128xf32>
    %42 = tpu.matmul %39, %1, %cst_38 {dimension_numbers = #tpu.dot_dimension_numbers<[1], [0], [0], [1], [0, 0, 1, 1], [], []>} : vector<8x128xf32>, vector<128x128xf32>, vector<8x128xf32> -> vector<8x128xf32>
    %43 = arith.addf %41, %42 : vector<8x128xf32>
    %44 = math.tanh %43 : vector<8x128xf32>
    %c56_39 = arith.constant 56 : index
    %c0_40 = arith.constant 0 : index
    %45 = vector.load %arg11[%c56_39, %c0_40] : memref<64x128xf32, #tpu.memory_space<vmem>>, vector<8x128xf32>
    tpu.vector_store %arg11[%c56_39, %c0_40], %44 {strides = array<i32>} : memref<64x128xf32, #tpu.memory_space<vmem>>, vector<8x128xf32>,
    %c0_41 = arith.constant 0 : index
    %c0_42 = arith.constant 0 : index
    %46 = vector.load %arg10[%c0_41, %c0_42] : memref<16x128xf32, #tpu.memory_space<vmem>>, vector<8x128xf32>
    tpu.vector_store %arg10[%c0_41, %c0_42], %44 {strides = array<i32>} : memref<16x128xf32, #tpu.memory_space<vmem>>, vector<8x128xf32>,
    %c0_43 = arith.constant 0 : index
    %c0_44 = arith.constant 0 : index
    %47 = vector.load %arg4[%c0_43, %c0_44] : memref<128x128xf32, #tpu.memory_space<vmem>>, vector<128x128xf32>
    %c0_45 = arith.constant 0 : index
    %c0_46 = arith.constant 0 : index
    %48 = vector.load %arg5[%c0_45, %c0_46] : memref<128x128xf32, #tpu.memory_space<vmem>>, vector<128x128xf32>
    %c0_47 = arith.constant 0 : index
    %c0_48 = arith.constant 0 : index
    %49 = vector.load %arg6[%c0_47, %c0_48] : memref<1x128xf32, #tpu.memory_space<vmem>>, vector<1x128xf32>
    %c0_49 = arith.constant 0 : index
    %c0_50 = arith.constant 0 : index
    %50 = vector.load %arg11[%c0_49, %c0_50] : memref<64x128xf32, #tpu.memory_space<vmem>>, vector<64x128xf32>
    %cst_51 = arith.constant dense<0.000000e+00> : vector<64x128xf32>
    %51 = tpu.matmul %50, %47, %cst_51 {dimension_numbers = #tpu.dot_dimension_numbers<[1], [0], [0], [1], [0, 0, 1, 1], [], []>} : vector<64x128xf32>, vector<128x128xf32>, vector<64x128xf32> -> vector<64x128xf32>
    %52 = vector.broadcast %49 : vector<1x128xf32> to vector<64x128xf32>
    %53 = arith.addf %51, %52 : vector<64x128xf32>
    %c0_52 = arith.constant 0 : index
    %c0_53 = arith.constant 0 : index
    %54 = vector.load %arg11[%c0_52, %c0_53] : memref<64x128xf32, #tpu.memory_space<vmem>>, vector<64x128xf32>
    tpu.vector_store %arg11[%c0_52, %c0_53], %53 {strides = array<i32>} : memref<64x128xf32, #tpu.memory_space<vmem>>, vector<64x128xf32>,
    %c0_54 = arith.constant 0 : index
    %c0_55 = arith.constant 0 : index
    %55 = vector.load %arg11[%c0_54, %c0_55] : memref<64x128xf32, #tpu.memory_space<vmem>>, vector<8x128xf32>
    %56 = math.tanh %55 : vector<8x128xf32>
    %c0_56 = arith.constant 0 : index
    %c0_57 = arith.constant 0 : index
    %57 = vector.load %arg11[%c0_56, %c0_57] : memref<64x128xf32, #tpu.memory_space<vmem>>, vector<8x128xf32>
    tpu.vector_store %arg11[%c0_56, %c0_57], %56 {strides = array<i32>} : memref<64x128xf32, #tpu.memory_space<vmem>>, vector<8x128xf32>,
    %c8_58 = arith.constant 8 : index
    %c0_59 = arith.constant 0 : index
    %58 = vector.load %arg11[%c8_58, %c0_59] : memref<64x128xf32, #tpu.memory_space<vmem>>, vector<8x128xf32>
    %cst_60 = arith.constant dense<0.000000e+00> : vector<8x128xf32>
    %59 = tpu.matmul %56, %48, %cst_60 {dimension_numbers = #tpu.dot_dimension_numbers<[1], [0], [0], [1], [0, 0, 1, 1], [], []>} : vector<8x128xf32>, vector<128x128xf32>, vector<8x128xf32> -> vector<8x128xf32>
    %60 = arith.addf %58, %59 : vector<8x128xf32>
    %61 = math.tanh %60 : vector<8x128xf32>
    %c8_61 = arith.constant 8 : index
    %c0_62 = arith.constant 0 : index
    %62 = vector.load %arg11[%c8_61, %c0_62] : memref<64x128xf32, #tpu.memory_space<vmem>>, vector<8x128xf32>
    tpu.vector_store %arg11[%c8_61, %c0_62], %61 {strides = array<i32>} : memref<64x128xf32, #tpu.memory_space<vmem>>, vector<8x128xf32>,
    %c16_63 = arith.constant 16 : index
    %c0_64 = arith.constant 0 : index
    %63 = vector.load %arg11[%c16_63, %c0_64] : memref<64x128xf32, #tpu.memory_space<vmem>>, vector<8x128xf32>
    %cst_65 = arith.constant dense<0.000000e+00> : vector<8x128xf32>
    %64 = tpu.matmul %61, %48, %cst_65 {dimension_numbers = #tpu.dot_dimension_numbers<[1], [0], [0], [1], [0, 0, 1, 1], [], []>} : vector<8x128xf32>, vector<128x128xf32>, vector<8x128xf32> -> vector<8x128xf32>
    %65 = arith.addf %63, %64 : vector<8x128xf32>
    %66 = math.tanh %65 : vector<8x128xf32>
    %c16_66 = arith.constant 16 : index
    %c0_67 = arith.constant 0 : index
    %67 = vector.load %arg11[%c16_66, %c0_67] : memref<64x128xf32, #tpu.memory_space<vmem>>, vector<8x128xf32>
    tpu.vector_store %arg11[%c16_66, %c0_67], %66 {strides = array<i32>} : memref<64x128xf32, #tpu.memory_space<vmem>>, vector<8x128xf32>,
    %c24_68 = arith.constant 24 : index
    %c0_69 = arith.constant 0 : index
    %68 = vector.load %arg11[%c24_68, %c0_69] : memref<64x128xf32, #tpu.memory_space<vmem>>, vector<8x128xf32>
    %cst_70 = arith.constant dense<0.000000e+00> : vector<8x128xf32>
    %69 = tpu.matmul %66, %48, %cst_70 {dimension_numbers = #tpu.dot_dimension_numbers<[1], [0], [0], [1], [0, 0, 1, 1], [], []>} : vector<8x128xf32>, vector<128x128xf32>, vector<8x128xf32> -> vector<8x128xf32>
    %70 = arith.addf %68, %69 : vector<8x128xf32>
    %71 = math.tanh %70 : vector<8x128xf32>
    %c24_71 = arith.constant 24 : index
    %c0_72 = arith.constant 0 : index
    %72 = vector.load %arg11[%c24_71, %c0_72] : memref<64x128xf32, #tpu.memory_space<vmem>>, vector<8x128xf32>
    tpu.vector_store %arg11[%c24_71, %c0_72], %71 {strides = array<i32>} : memref<64x128xf32, #tpu.memory_space<vmem>>, vector<8x128xf32>,
    %c32_73 = arith.constant 32 : index
    %c0_74 = arith.constant 0 : index
    %73 = vector.load %arg11[%c32_73, %c0_74] : memref<64x128xf32, #tpu.memory_space<vmem>>, vector<8x128xf32>
    %cst_75 = arith.constant dense<0.000000e+00> : vector<8x128xf32>
    %74 = tpu.matmul %71, %48, %cst_75 {dimension_numbers = #tpu.dot_dimension_numbers<[1], [0], [0], [1], [0, 0, 1, 1], [], []>} : vector<8x128xf32>, vector<128x128xf32>, vector<8x128xf32> -> vector<8x128xf32>
    %75 = arith.addf %73, %74 : vector<8x128xf32>
    %76 = math.tanh %75 : vector<8x128xf32>
    %c32_76 = arith.constant 32 : index
    %c0_77 = arith.constant 0 : index
    %77 = vector.load %arg11[%c32_76, %c0_77] : memref<64x128xf32, #tpu.memory_space<vmem>>, vector<8x128xf32>
    tpu.vector_store %arg11[%c32_76, %c0_77], %76 {strides = array<i32>} : memref<64x128xf32, #tpu.memory_space<vmem>>, vector<8x128xf32>,
    %c40_78 = arith.constant 40 : index
    %c0_79 = arith.constant 0 : index
    %78 = vector.load %arg11[%c40_78, %c0_79] : memref<64x128xf32, #tpu.memory_space<vmem>>, vector<8x128xf32>
    %cst_80 = arith.constant dense<0.000000e+00> : vector<8x128xf32>
    %79 = tpu.matmul %76, %48, %cst_80 {dimension_numbers = #tpu.dot_dimension_numbers<[1], [0], [0], [1], [0, 0, 1, 1], [], []>} : vector<8x128xf32>, vector<128x128xf32>, vector<8x128xf32> -> vector<8x128xf32>
    %80 = arith.addf %78, %79 : vector<8x128xf32>
    %81 = math.tanh %80 : vector<8x128xf32>
    %c40_81 = arith.constant 40 : index
    %c0_82 = arith.constant 0 : index
    %82 = vector.load %arg11[%c40_81, %c0_82] : memref<64x128xf32, #tpu.memory_space<vmem>>, vector<8x128xf32>
    tpu.vector_store %arg11[%c40_81, %c0_82], %81 {strides = array<i32>} : memref<64x128xf32, #tpu.memory_space<vmem>>, vector<8x128xf32>,
    %c48_83 = arith.constant 48 : index
    %c0_84 = arith.constant 0 : index
    %83 = vector.load %arg11[%c48_83, %c0_84] : memref<64x128xf32, #tpu.memory_space<vmem>>, vector<8x128xf32>
    %cst_85 = arith.constant dense<0.000000e+00> : vector<8x128xf32>
    %84 = tpu.matmul %81, %48, %cst_85 {dimension_numbers = #tpu.dot_dimension_numbers<[1], [0], [0], [1], [0, 0, 1, 1], [], []>} : vector<8x128xf32>, vector<128x128xf32>, vector<8x128xf32> -> vector<8x128xf32>
    %85 = arith.addf %83, %84 : vector<8x128xf32>
    %86 = math.tanh %85 : vector<8x128xf32>
    %c48_86 = arith.constant 48 : index
    %c0_87 = arith.constant 0 : index
    %87 = vector.load %arg11[%c48_86, %c0_87] : memref<64x128xf32, #tpu.memory_space<vmem>>, vector<8x128xf32>
    tpu.vector_store %arg11[%c48_86, %c0_87], %86 {strides = array<i32>} : memref<64x128xf32, #tpu.memory_space<vmem>>, vector<8x128xf32>,
    %c56_88 = arith.constant 56 : index
    %c0_89 = arith.constant 0 : index
    %88 = vector.load %arg11[%c56_88, %c0_89] : memref<64x128xf32, #tpu.memory_space<vmem>>, vector<8x128xf32>
    %cst_90 = arith.constant dense<0.000000e+00> : vector<8x128xf32>
    %89 = tpu.matmul %86, %48, %cst_90 {dimension_numbers = #tpu.dot_dimension_numbers<[1], [0], [0], [1], [0, 0, 1, 1], [], []>} : vector<8x128xf32>, vector<128x128xf32>, vector<8x128xf32> -> vector<8x128xf32>
    %90 = arith.addf %88, %89 : vector<8x128xf32>
    %91 = math.tanh %90 : vector<8x128xf32>
    %c56_91 = arith.constant 56 : index
    %c0_92 = arith.constant 0 : index
    %92 = vector.load %arg11[%c56_91, %c0_92] : memref<64x128xf32, #tpu.memory_space<vmem>>, vector<8x128xf32>
    tpu.vector_store %arg11[%c56_91, %c0_92], %91 {strides = array<i32>} : memref<64x128xf32, #tpu.memory_space<vmem>>, vector<8x128xf32>,
    %c8_93 = arith.constant 8 : index
    %c0_94 = arith.constant 0 : index
    %93 = vector.load %arg10[%c8_93, %c0_94] : memref<16x128xf32, #tpu.memory_space<vmem>>, vector<8x128xf32>
    tpu.vector_store %arg10[%c8_93, %c0_94], %91 {strides = array<i32>} : memref<16x128xf32, #tpu.memory_space<vmem>>, vector<8x128xf32>,
    %c0_95 = arith.constant 0 : index
    %c0_96 = arith.constant 0 : index
    %94 = vector.load %arg11[%c0_95, %c0_96] : memref<64x128xf32, #tpu.memory_space<vmem>>, vector<64x128xf32>
    %c0_97 = arith.constant 0 : index
    %c0_98 = arith.constant 0 : index
    %95 = vector.load %arg7[%c0_97, %c0_98] : memref<128x128xf32, #tpu.memory_space<vmem>>, vector<128x128xf32>
    %cst_99 = arith.constant dense<0.000000e+00> : vector<64x128xf32>
    %96 = tpu.matmul %94, %95, %cst_99 {dimension_numbers = #tpu.dot_dimension_numbers<[1], [0], [0], [1], [0, 0, 1, 1], [], []>} : vector<64x128xf32>, vector<128x128xf32>, vector<64x128xf32> -> vector<64x128xf32>
    %c0_100 = arith.constant 0 : index
    %c0_101 = arith.constant 0 : index
    %97 = vector.load %arg8[%c0_100, %c0_101] : memref<1x128xf32, #tpu.memory_space<vmem>>, vector<1x128xf32>
    %98 = vector.broadcast %97 : vector<1x128xf32> to vector<64x128xf32>
    %99 = arith.addf %96, %98 : vector<64x128xf32>
    %100 = math.tanh %99 : vector<64x128xf32>
    %c0_102 = arith.constant 0 : index
    %c0_103 = arith.constant 0 : index
    %101 = vector.load %arg9[%c0_102, %c0_103] : memref<64x128xf32, #tpu.memory_space<vmem>>, vector<64x128xf32>
    tpu.vector_store %arg9[%c0_102, %c0_103], %100 {strides = array<i32>} : memref<64x128xf32, #tpu.memory_space<vmem>>, vector<64x128xf32>,
    return
  }
}

</mosaic_0001>

<llo_original>
// kernel: tpu_custom_call.1
$region0: #{tpu_custom_call.1}
  #allocation0 [shape = 'u32[]', space=smem, size = 0x4, offset = 0x4, fixed_abs, tag = 'smem constant byte address 0x4 - core index']
  #allocation1 [shape = 'u32[72,128]{1,0:T(1,128)}', space=vmem, size = 0x9000, scoped, tag = 'internal scratch']
  #allocation2 [shape = 'f32[64,128]{1,0:T(8,128)}', space=vmem, size = 0x8000, scoped, tag = 'scratch operand']
  %s0 = inlined_call_operand.hbm [shape: f32[64,128], index: 0, kind: input, shape index: {}]
  %s1 = inlined_call_operand.hbm [shape: f32[128,128], index: 1, kind: input, shape index: {}]
  %s2 = inlined_call_operand.hbm [shape: f32[128,128], index: 2, kind: input, shape index: {}]
  %s3 = inlined_call_operand.vmem [shape: f32[1,128], index: 3, kind: input, shape index: {}]
  %s4 = inlined_call_operand.hbm [shape: f32[128,128], index: 4, kind: input, shape index: {}]
  %s5 = inlined_call_operand.hbm [shape: f32[128,128], index: 5, kind: input, shape index: {}]
  %s6 = inlined_call_operand.vmem [shape: f32[1,128], index: 6, kind: input, shape index: {}]
  %s7 = inlined_call_operand.hbm [shape: f32[128,128], index: 7, kind: input, shape index: {}]
  %s8 = inlined_call_operand.vmem [shape: f32[1,128], index: 8, kind: input, shape index: {}]
  %s9 = inlined_call_operand.hbm [shape: f32[64,128], index: 9, kind: output, shape index: {0}]
  %s10 = inlined_call_operand.hbm [shape: f32[16,128], index: 10, kind: output, shape index: {1}]
  %11 = xla_tuple %s9, %s10
  %s12 = sld [smem:[#allocation0]]
  $region78: #{tpu_custom_call.1} parent=0
    _
  %s14 = ssub.s32 1, %s12
  %s15 = scalar_select 0, %s14, %s12
  $region1: #{tpu_custom_call.1} parent=0
    #allocation3 [shape = 'u8[32768]{0}', space=vmem, size = 0x8000, scoped, tag = 'input window, operand 0, single buffered']
    #allocation4 [shape = 's32[1]{0}', space=sflag, size = 0x4, scoped, tag = 'scoped memory for tpu_custom_call.1']
    #allocation5 [shape = 's32[1]{0}', space=sflag, size = 0x4, scoped, tag = 'scoped memory for tpu_custom_call.1']
    #allocation6 [shape = 'u8[65536]{0}', space=vmem, size = 0x10000, scoped, tag = 'input window, operand 1, single buffered']
    #allocation7 [shape = 's32[1]{0}', space=sflag, size = 0x4, scoped, tag = 'scoped memory for tpu_custom_call.1']
    #allocation8 [shape = 'u8[65536]{0}', space=vmem, size = 0x10000, scoped, tag = 'input window, operand 2, single buffered']
    #allocation9 [shape = 'u8[65536]{0}', space=vmem, size = 0x10000, scoped, tag = 'input window, operand 4, single buffered']
    #allocation10 [shape = 's32[1]{0}', space=sflag, size = 0x4, scoped, tag = 'scoped memory for tpu_custom_call.1']
    #allocation11 [shape = 'u8[65536]{0}', space=vmem, size = 0x10000, scoped, tag = 'input window, operand 5, single buffered']
    #allocation12 [shape = 'u8[65536]{0}', space=vmem, size = 0x10000, scoped, tag = 'input window, operand 7, single buffered']
    #allocation13 [shape = 's32[1]{0}', space=sflag, size = 0x4, scoped, tag = 'scoped memory for tpu_custom_call.1']
    #allocation14 [shape = 'u8[32768]{0}', space=vmem, size = 0x8000, scoped, tag = 'output window, operand 0, single buffered']
    #allocation15 [shape = 'u8[8192]{0}', space=vmem, size = 0x2000, scoped, tag = 'output window, operand 1, single buffered']
    #allocation16 [shape = 's32[1]{0}', space=sflag, size = 0x4, scoped, tag = 'scoped memory for tpu_custom_call.1']
    %16 = vsyncpa [#allocation4], 0
    %17 = vsyncpa [#allocation7], 0
    %18 = vsyncpa [#allocation10], 0
    %19 = vsyncpa [#allocation13], 0
    %20 = vsyncpa [#allocation5], 0
    %21 = vsyncpa [#allocation16], 0
    // Predicated region
    $region2: #{tpu_custom_call.1} parent=1 // pred_check
      _
    $region3: #{tpu_custom_call.1} parent=1 // pred_check_branch
      %23 = sbr.rel (0) target = $region5
    $region4: #{tpu_custom_call.1} parent=1 // pred_region
      %25 = vsyncadd [#allocation4], 0
      %s26 = sshll.u32 %s0, 4
      %s27 = int_to_ptr.hbm [resolvable:$true] %s26
      %s28 = sshll.u32 [#allocation3], 4
      %s29 = int_to_ptr.vmem [resolvable:$true] %s28
      %34 = dma.hbm_to_vmem [thread:$0]  %s27, 1024, %s29, [#allocation4], 128, 128, 8
    $region5: #{tpu_custom_call.1} parent=1 // pred_fallthru
      _
    // Predicated region
    $region6: #{tpu_custom_call.1} parent=1 // pred_check
      _
    $region7: #{tpu_custom_call.1} parent=1 // pred_check_branch
      %36 = sbr.rel (0) target = $region9
    $region8: #{tpu_custom_call.1} parent=1 // pred_region
      %38 = vsyncadd [#allocation7], 0
      %s39 = sshll.u32 %s1, 4
      %s40 = int_to_ptr.hbm [resolvable:$true] %s39
      %s41 = sshll.u32 [#allocation6], 4
      %s42 = int_to_ptr.vmem [resolvable:$true] %s41
      %47 = dma.hbm_to_vmem [thread:$0]  %s40, 2048, %s42, [#allocation7], 128, 128, 8
    $region9: #{tpu_custom_call.1} parent=1 // pred_fallthru
      _
    // Predicated region
    $region10: #{tpu_custom_call.1} parent=1 // pred_check
      _
    $region11: #{tpu_custom_call.1} parent=1 // pred_check_branch
      %49 = sbr.rel (0) target = $region13
    $region12: #{tpu_custom_call.1} parent=1 // pred_region
      %51 = vsyncadd [#allocation7], 0
      %s52 = sshll.u32 %s2, 4
      %s53 = int_to_ptr.hbm [resolvable:$true] %s52
      %s54 = sshll.u32 [#allocation8], 4
      %s55 = int_to_ptr.vmem [resolvable:$true] %s54
      %60 = dma.hbm_to_vmem [thread:$0]  %s53, 2048, %s55, [#allocation7], 128, 128, 8
    $region13: #{tpu_custom_call.1} parent=1 // pred_fallthru
      _
    // Predicated region
    $region14: #{tpu_custom_call.1} parent=1 // pred_check
      _
    $region15: #{tpu_custom_call.1} parent=1 // pred_check_branch
      %62 = sbr.rel (0) target = $region17
    $region16: #{tpu_custom_call.1} parent=1 // pred_region
      _
    $region17: #{tpu_custom_call.1} parent=1 // pred_fallthru
      _
    // Predicated region
    $region18: #{tpu_custom_call.1} parent=1 // pred_check
      _
    $region19: #{tpu_custom_call.1} parent=1 // pred_check_branch
      %64 = sbr.rel (0) target = $region21
    $region20: #{tpu_custom_call.1} parent=1 // pred_region
      %66 = vsyncadd [#allocation10], 0
      %s67 = sshll.u32 %s4, 4
      %s68 = int_to_ptr.hbm [resolvable:$true] %s67
      %s69 = sshll.u32 [#allocation9], 4
      %s70 = int_to_ptr.vmem [resolvable:$true] %s69
      %75 = dma.hbm_to_vmem [thread:$0]  %s68, 2048, %s70, [#allocation10], 128, 128, 8
    $region21: #{tpu_custom_call.1} parent=1 // pred_fallthru
      _
    // Predicated region
    $region22: #{tpu_custom_call.1} parent=1 // pred_check
      _
    $region23: #{tpu_custom_call.1} parent=1 // pred_check_branch
      %77 = sbr.rel (0) target = $region25
    $region24: #{tpu_custom_call.1} parent=1 // pred_region
      %79 = vsyncadd [#allocation10], 0
      %s80 = sshll.u32 %s5, 4
      %s81 = int_to_ptr.hbm [resolvable:$true] %s80
      %s82 = sshll.u32 [#allocation11], 4
      %s83 = int_to_ptr.vmem [resolvable:$true] %s82
      %88 = dma.hbm_to_vmem [thread:$0]  %s81, 2048, %s83, [#allocation10], 128, 128, 8
    $region25: #{tpu_custom_call.1} parent=1 // pred_fallthru
      _
    // Predicated region
    $region26: #{tpu_custom_call.1} parent=1 // pred_check
      _
    $region27: #{tpu_custom_call.1} parent=1 // pred_check_branch
      %90 = sbr.rel (0) target = $region29
    $region28: #{tpu_custom_call.1} parent=1 // pred_region
      _
    $region29: #{tpu_custom_call.1} parent=1 // pred_fallthru
      _
    // Predicated region
    $region30: #{tpu_custom_call.1} parent=1 // pred_check
      _
    $region31: #{tpu_custom_call.1} parent=1 // pred_check_branch
      %92 = sbr.rel (0) target = $region33
    $region32: #{tpu_custom_call.1} parent=1 // pred_region
      %94 = vsyncadd [#allocation13], 0
      %s95 = sshll.u32 %s7, 4
      %s96 = int_to_ptr.hbm [resolvable:$true] %s95
      %s97 = sshll.u32 [#allocation12], 4
      %s98 = int_to_ptr.vmem [resolvable:$true] %s97
      %103 = dma.hbm_to_vmem [thread:$0]  %s96, 2048, %s98, [#allocation13], 128, 128, 8
    $region33: #{tpu_custom_call.1} parent=1 // pred_fallthru
      _
    // Predicated region
    $region34: #{tpu_custom_call.1} parent=1 // pred_check
      _
    $region35: #{tpu_custom_call.1} parent=1 // pred_check_branch
      %105 = sbr.rel (0) target = $region37
    $region36: #{tpu_custom_call.1} parent=1 // pred_region
      _
    $region37: #{tpu_custom_call.1} parent=1 // pred_fallthru
      _
    // Predicated region
    $region38: #{tpu_custom_call.1} parent=1 // pred_check
      _
    $region39: #{tpu_custom_call.1} parent=1 // pred_check_branch
      %107 = sbr.rel (0) target = $region41
    $region40: #{tpu_custom_call.1} parent=1 // pred_region
      %109 = dma.done [#allocation4], 1024
    $region41: #{tpu_custom_call.1} parent=1 // pred_fallthru
      _
    // Predicated region
    $region42: #{tpu_custom_call.1} parent=1 // pred_check
      _
    $region43: #{tpu_custom_call.1} parent=1 // pred_check_branch
      %111 = sbr.rel (0) target = $region45
    $region44: #{tpu_custom_call.1} parent=1 // pred_region
      %113 = dma.done [#allocation7], 2048
    $region45: #{tpu_custom_call.1} parent=1 // pred_fallthru
      _
    // Predicated region
    $region46: #{tpu_custom_call.1} parent=1 // pred_check
      _
    $region47: #{tpu_custom_call.1} parent=1 // pred_check_branch
      %115 = sbr.rel (0) target = $region49
    $region48: #{tpu_custom_call.1} parent=1 // pred_region
      %117 = dma.done [#allocation7], 2048
    $region49: #{tpu_custom_call.1} parent=1 // pred_fallthru
      _
    // Predicated region
    $region50: #{tpu_custom_call.1} parent=1 // pred_check
      _
    $region51: #{tpu_custom_call.1} parent=1 // pred_check_branch
      %119 = sbr.rel (0) target = $region53
    $region52: #{tpu_custom_call.1} parent=1 // pred_region
      %121 = dma.done [#allocation10], 2048
    $region53: #{tpu_custom_call.1} parent=1 // pred_fallthru
      _
    // Predicated region
    $region54: #{tpu_custom_call.1} parent=1 // pred_check
      _
    $region55: #{tpu_custom_call.1} parent=1 // pred_check_branch
      %123 = sbr.rel (0) target = $region57
    $region56: #{tpu_custom_call.1} parent=1 // pred_region
      %125 = dma.done [#allocation10], 2048
    $region57: #{tpu_custom_call.1} parent=1 // pred_fallthru
      _
    // Predicated region
    $region58: #{tpu_custom_call.1} parent=1 // pred_check
      _
    $region59: #{tpu_custom_call.1} parent=1 // pred_check_branch
      %127 = sbr.rel (0) target = $region61
    $region60: #{tpu_custom_call.1} parent=1 // pred_region
      %129 = dma.done [#allocation13], 2048
    $region61: #{tpu_custom_call.1} parent=1 // pred_fallthru
      _
    %v130 = vld [vmem:[#allocation6] sm:$0xff]
    %v131 = vld [vmem:[#allocation6 + $0x8] sm:$0xff]
    %v132 = vld [vmem:[#allocation6 + $0x10] sm:$0xff]
    %v133 = vld [vmem:[#allocation6 + $0x18] sm:$0xff]
    %v134 = vld [vmem:[#allocation6 + $0x20] sm:$0xff]
    %v135 = vld [vmem:[#allocation6 + $0x28] sm:$0xff]
    %v136 = vld [vmem:[#allocation6 + $0x30] sm:$0xff]
    %v137 = vld [vmem:[#allocation6 + $0x38] sm:$0xff]
    %v138 = vld [vmem:[#allocation6 + $0x40] sm:$0xff]
    %v139 = vld [vmem:[#allocation6 + $0x48] sm:$0xff]
    %v140 = vld [vmem:[#allocation6 + $0x50] sm:$0xff]
    %v141 = vld [vmem:[#allocation6 + $0x58] sm:$0xff]
    %v142 = vld [vmem:[#allocation6 + $0x60] sm:$0xff]
    %v143 = vld [vmem:[#allocation6 + $0x68] sm:$0xff]
    %v144 = vld [vmem:[#allocation6 + $0x70] sm:$0xff]
    %v145 = vld [vmem:[#allocation6 + $0x78] sm:$0xff]
    %v146 = vld [vmem:[#allocation8] sm:$0xff]
    %v147 = vld [vmem:[#allocation8 + $0x8] sm:$0xff]
    %v148 = vld [vmem:[#allocation8 + $0x10] sm:$0xff]
    %v149 = vld [vmem:[#allocation8 + $0x18] sm:$0xff]
    %v150 = vld [vmem:[#allocation8 + $0x20] sm:$0xff]
    %v151 = vld [vmem:[#allocation8 + $0x28] sm:$0xff]
    %v152 = vld [vmem:[#allocation8 + $0x30] sm:$0xff]
    %v153 = vld [vmem:[#allocation8 + $0x38] sm:$0xff]
    %v154 = vld [vmem:[#allocation8 + $0x40] sm:$0xff]
    %v155 = vld [vmem:[#allocation8 + $0x48] sm:$0xff]
    %v156 = vld [vmem:[#allocation8 + $0x50] sm:$0xff]
    %v157 = vld [vmem:[#allocation8 + $0x58] sm:$0xff]
    %v158 = vld [vmem:[#allocation8 + $0x60] sm:$0xff]
    %v159 = vld [vmem:[#allocation8 + $0x68] sm:$0xff]
    %v160 = vld [vmem:[#allocation8 + $0x70] sm:$0xff]
    %v161 = vld [vmem:[#allocation8 + $0x78] sm:$0xff]
    %v162 = vld [vmem:[%s3] sm:$0x1]
    %v163 = vld [vmem:[#allocation3] sm:$0xff]
    %v164 = vld [vmem:[#allocation3 + $0x8] sm:$0xff]
    %v165 = vld [vmem:[#allocation3 + $0x10] sm:$0xff]
    %v166 = vld [vmem:[#allocation3 + $0x18] sm:$0xff]
    %v167 = vld [vmem:[#allocation3 + $0x20] sm:$0xff]
    %v168 = vld [vmem:[#allocation3 + $0x28] sm:$0xff]
    %v169 = vld [vmem:[#allocation3 + $0x30] sm:$0xff]
    %v170 = vld [vmem:[#allocation3 + $0x38] sm:$0xff]
    %v172 = vperm.slane %v162, 0
    %174 = vmatpush.msra.mxu0 %v145
    %175 = vmatpush.msra.mxu0 %v144
    %176 = vmatpush.msra.mxu0 %v143
    %177 = vmatpush.msra.mxu0 %v142
    %178 = vmatpush.msra.mxu0 %v141
    %179 = vmatpush.msra.mxu0 %v140
    %180 = vmatpush.msra.mxu0 %v139
    %181 = vmatpush.msra.mxu0 %v138
    %182 = vmatpush.msra.mxu0 %v137
    %183 = vmatpush.msra.mxu0 %v136
    %184 = vmatpush.msra.mxu0 %v135
    %185 = vmatpush.msra.mxu0 %v134
    %186 = vmatpush.msra.mxu0 %v133
    %187 = vmatpush.msra.mxu0 %v132
    %188 = vmatpush.msra.mxu0 %v131
    %189 = vmatpush.msra.mxu0 %v130
    %190 = vmatmul.f32.gmra.mxu0 %v163
    %v191 = vpop.f32.mrf.mxu0
    %v192 = vadd.f32 %v172, %v191
    %193 = vmatmul.f32.gmra.mxu0 %v164
    %v194 = vpop.f32.mrf.mxu0
    %v195 = vadd.f32 %v172, %v194
    %196 = vmatmul.f32.gmra.mxu0 %v165
    %v197 = vpop.f32.mrf.mxu0
    %v198 = vadd.f32 %v172, %v197
    %199 = vmatmul.f32.gmra.mxu0 %v166
    %v200 = vpop.f32.mrf.mxu0
    %v201 = vadd.f32 %v172, %v200
    %202 = vmatmul.f32.gmra.mxu0 %v167
    %v203 = vpop.f32.mrf.mxu0
    %v204 = vadd.f32 %v172, %v203
    %205 = vmatmul.f32.gmra.mxu0 %v168
    %v206 = vpop.f32.mrf.mxu0
    %v207 = vadd.f32 %v172, %v206
    %208 = vmatmul.f32.gmra.mxu0 %v169
    %v209 = vpop.f32.mrf.mxu0
    %v210 = vadd.f32 %v172, %v209
    %211 = vmatmul.f32.gmra.mxu0 %v170
    %v212 = vpop.f32.mrf.mxu0
    %v213 = vadd.f32 %v172, %v212
    %214 = vdwg.mxu0
    %215 = vst [vmem:[#allocation2] sm:$0xff] %v192
    %216 = vst [vmem:[#allocation2 + $0x8] sm:$0xff] %v195
    %217 = vst [vmem:[#allocation2 + $0x10] sm:$0xff] %v198
    %218 = vst [vmem:[#allocation2 + $0x18] sm:$0xff] %v201
    %219 = vst [vmem:[#allocation2 + $0x20] sm:$0xff] %v204
    %220 = vst [vmem:[#allocation2 + $0x28] sm:$0xff] %v207
    %221 = vst [vmem:[#allocation2 + $0x30] sm:$0xff] %v210
    %222 = vst [vmem:[#allocation2 + $0x38] sm:$0xff] %v213
    %v223 = vld [vmem:[#allocation2] sm:$0xff]
    %v224 = vtanh.pop %v223
    %225 = vst [vmem:[#allocation2] sm:$0xff] %v224
    %v226 = vld [vmem:[#allocation2 + $0x8] sm:$0xff]
    %227 = vmatpush.msra.mxu0 %v161
    %228 = vmatpush.msra.mxu0 %v160
    %229 = vmatpush.msra.mxu0 %v159
    %230 = vmatpush.msra.mxu0 %v158
    %231 = vmatpush.msra.mxu0 %v157
    %232 = vmatpush.msra.mxu0 %v156
    %233 = vmatpush.msra.mxu0 %v155
    %234 = vmatpush.msra.mxu0 %v154
    %235 = vmatpush.msra.mxu0 %v153
    %236 = vmatpush.msra.mxu0 %v152
    %237 = vmatpush.msra.mxu0 %v151
    %238 = vmatpush.msra.mxu0 %v150
    %239 = vmatpush.msra.mxu0 %v149
    %240 = vmatpush.msra.mxu0 %v148
    %241 = vmatpush.msra.mxu0 %v147
    %242 = vmatpush.msra.mxu0 %v146
    %243 = vmatmul.f32.gmra.mxu0 %v224
    %v244 = vpop.f32.mrf.mxu0
    %v245 = vadd.f32 0.0, %v244
    %246 = vdwg.mxu0
    %v247 = vadd.f32 %v226, %v245
    %v248 = vtanh.pop %v247
    %249 = vst [vmem:[#allocation2 + $0x8] sm:$0xff] %v248
    %v250 = vld [vmem:[#allocation2 + $0x10] sm:$0xff]
    %251 = vmatpush.msra.mxu0 %v161
    %252 = vmatpush.msra.mxu0 %v160
    %253 = vmatpush.msra.mxu0 %v159
    %254 = vmatpush.msra.mxu0 %v158
    %255 = vmatpush.msra.mxu0 %v157
    %256 = vmatpush.msra.mxu0 %v156
    %257 = vmatpush.msra.mxu0 %v155
    %258 = vmatpush.msra.mxu0 %v154
    %259 = vmatpush.msra.mxu0 %v153
    %260 = vmatpush.msra.mxu0 %v152
    %261 = vmatpush.msra.mxu0 %v151
    %262 = vmatpush.msra.mxu0 %v150
    %263 = vmatpush.msra.mxu0 %v149
    %264 = vmatpush.msra.mxu0 %v148
    %265 = vmatpush.msra.mxu0 %v147
    %266 = vmatpush.msra.mxu0 %v146
    %267 = vmatmul.f32.gmra.mxu0 %v248
    %v268 = vpop.f32.mrf.mxu0
    %v269 = vadd.f32 0.0, %v268
    %270 = vdwg.mxu0
    %v271 = vadd.f32 %v250, %v269
    %v272 = vtanh.pop %v271
    %273 = vst [vmem:[#allocation2 + $0x10] sm:$0xff] %v272
    %v274 = vld [vmem:[#allocation2 + $0x18] sm:$0xff]
    %275 = vmatpush.msra.mxu0 %v161
    %276 = vmatpush.msra.mxu0 %v160
    %277 = vmatpush.msra.mxu0 %v159
    %278 = vmatpush.msra.mxu0 %v158
    %279 = vmatpush.msra.mxu0 %v157
    %280 = vmatpush.msra.mxu0 %v156
    %281 = vmatpush.msra.mxu0 %v155
    %282 = vmatpush.msra.mxu0 %v154
    %283 = vmatpush.msra.mxu0 %v153
    %284 = vmatpush.msra.mxu0 %v152
    %285 = vmatpush.msra.mxu0 %v151
    %286 = vmatpush.msra.mxu0 %v150
    %287 = vmatpush.msra.mxu0 %v149
    %288 = vmatpush.msra.mxu0 %v148
    %289 = vmatpush.msra.mxu0 %v147
    %290 = vmatpush.msra.mxu0 %v146
    %291 = vmatmul.f32.gmra.mxu0 %v272
    %v292 = vpop.f32.mrf.mxu0
    %v293 = vadd.f32 0.0, %v292
    %294 = vdwg.mxu0
    %v295 = vadd.f32 %v274, %v293
    %v296 = vtanh.pop %v295
    %297 = vst [vmem:[#allocation2 + $0x18] sm:$0xff] %v296
    %v298 = vld [vmem:[#allocation2 + $0x20] sm:$0xff]
    %299 = vmatpush.msra.mxu0 %v161
    %300 = vmatpush.msra.mxu0 %v160
    %301 = vmatpush.msra.mxu0 %v159
    %302 = vmatpush.msra.mxu0 %v158
    %303 = vmatpush.msra.mxu0 %v157
    %304 = vmatpush.msra.mxu0 %v156
    %305 = vmatpush.msra.mxu0 %v155
    %306 = vmatpush.msra.mxu0 %v154
    %307 = vmatpush.msra.mxu0 %v153
    %308 = vmatpush.msra.mxu0 %v152
    %309 = vmatpush.msra.mxu0 %v151
    %310 = vmatpush.msra.mxu0 %v150
    %311 = vmatpush.msra.mxu0 %v149
    %312 = vmatpush.msra.mxu0 %v148
    %313 = vmatpush.msra.mxu0 %v147
    %314 = vmatpush.msra.mxu0 %v146
    %315 = vmatmul.f32.gmra.mxu0 %v296
    %v316 = vpop.f32.mrf.mxu0
    %v317 = vadd.f32 0.0, %v316
    %318 = vdwg.mxu0
    %v319 = vadd.f32 %v298, %v317
    %v320 = vtanh.pop %v319
    %321 = vst [vmem:[#allocation2 + $0x20] sm:$0xff] %v320
    %v322 = vld [vmem:[#allocation2 + $0x28] sm:$0xff]
    %323 = vmatpush.msra.mxu0 %v161
    %324 = vmatpush.msra.mxu0 %v160
    %325 = vmatpush.msra.mxu0 %v159
    %326 = vmatpush.msra.mxu0 %v158
    %327 = vmatpush.msra.mxu0 %v157
    %328 = vmatpush.msra.mxu0 %v156
    %329 = vmatpush.msra.mxu0 %v155
    %330 = vmatpush.msra.mxu0 %v154
    %331 = vmatpush.msra.mxu0 %v153
    %332 = vmatpush.msra.mxu0 %v152
    %333 = vmatpush.msra.mxu0 %v151
    %334 = vmatpush.msra.mxu0 %v150
    %335 = vmatpush.msra.mxu0 %v149
    %336 = vmatpush.msra.mxu0 %v148
    %337 = vmatpush.msra.mxu0 %v147
    %338 = vmatpush.msra.mxu0 %v146
    %339 = vmatmul.f32.gmra.mxu0 %v320
    %v340 = vpop.f32.mrf.mxu0
    %v341 = vadd.f32 0.0, %v340
    %342 = vdwg.mxu0
    %v343 = vadd.f32 %v322, %v341
    %v344 = vtanh.pop %v343
    %345 = vst [vmem:[#allocation2 + $0x28] sm:$0xff] %v344
    %v346 = vld [vmem:[#allocation2 + $0x30] sm:$0xff]
    %347 = vmatpush.msra.mxu0 %v161
    %348 = vmatpush.msra.mxu0 %v160
    %349 = vmatpush.msra.mxu0 %v159
    %350 = vmatpush.msra.mxu0 %v158
    %351 = vmatpush.msra.mxu0 %v157
    %352 = vmatpush.msra.mxu0 %v156
    %353 = vmatpush.msra.mxu0 %v155
    %354 = vmatpush.msra.mxu0 %v154
    %355 = vmatpush.msra.mxu0 %v153
    %356 = vmatpush.msra.mxu0 %v152
    %357 = vmatpush.msra.mxu0 %v151
    %358 = vmatpush.msra.mxu0 %v150
    %359 = vmatpush.msra.mxu0 %v149
    %360 = vmatpush.msra.mxu0 %v148
    %361 = vmatpush.msra.mxu0 %v147
    %362 = vmatpush.msra.mxu0 %v146
    %363 = vmatmul.f32.gmra.mxu0 %v344
    %v364 = vpop.f32.mrf.mxu0
    %v365 = vadd.f32 0.0, %v364
    %366 = vdwg.mxu0
    %v367 = vadd.f32 %v346, %v365
    %v368 = vtanh.pop %v367
    %369 = vst [vmem:[#allocation2 + $0x30] sm:$0xff] %v368
    %v370 = vld [vmem:[#allocation2 + $0x38] sm:$0xff]
    %371 = vmatpush.msra.mxu0 %v161
    %372 = vmatpush.msra.mxu0 %v160
    %373 = vmatpush.msra.mxu0 %v159
    %374 = vmatpush.msra.mxu0 %v158
    %375 = vmatpush.msra.mxu0 %v157
    %376 = vmatpush.msra.mxu0 %v156
    %377 = vmatpush.msra.mxu0 %v155
    %378 = vmatpush.msra.mxu0 %v154
    %379 = vmatpush.msra.mxu0 %v153
    %380 = vmatpush.msra.mxu0 %v152
    %381 = vmatpush.msra.mxu0 %v151
    %382 = vmatpush.msra.mxu0 %v150
    %383 = vmatpush.msra.mxu0 %v149
    %384 = vmatpush.msra.mxu0 %v148
    %385 = vmatpush.msra.mxu0 %v147
    %386 = vmatpush.msra.mxu0 %v146
    %387 = vmatmul.f32.gmra.mxu0 %v368
    %v388 = vpop.f32.mrf.mxu0
    %v389 = vadd.f32 0.0, %v388
    %390 = vdwg.mxu0
    %v391 = vadd.f32 %v370, %v389
    %v392 = vtanh.pop %v391
    %393 = vst [vmem:[#allocation2 + $0x38] sm:$0xff] %v392
    %394 = vst [vmem:[#allocation15] sm:$0xff] %v392
    %v395 = vld [vmem:[#allocation9] sm:$0xff]
    %v396 = vld [vmem:[#allocation9 + $0x8] sm:$0xff]
    %v397 = vld [vmem:[#allocation9 + $0x10] sm:$0xff]
    %v398 = vld [vmem:[#allocation9 + $0x18] sm:$0xff]
    %v399 = vld [vmem:[#allocation9 + $0x20] sm:$0xff]
    %v400 = vld [vmem:[#allocation9 + $0x28] sm:$0xff]
    %v401 = vld [vmem:[#allocation9 + $0x30] sm:$0xff]
    %v402 = vld [vmem:[#allocation9 + $0x38] sm:$0xff]
    %v403 = vld [vmem:[#allocation9 + $0x40] sm:$0xff]
    %v404 = vld [vmem:[#allocation9 + $0x48] sm:$0xff]
    %v405 = vld [vmem:[#allocation9 + $0x50] sm:$0xff]
    %v406 = vld [vmem:[#allocation9 + $0x58] sm:$0xff]
    %v407 = vld [vmem:[#allocation9 + $0x60] sm:$0xff]
    %v408 = vld [vmem:[#allocation9 + $0x68] sm:$0xff]
    %v409 = vld [vmem:[#allocation9 + $0x70] sm:$0xff]
    %v410 = vld [vmem:[#allocation9 + $0x78] sm:$0xff]
    %v411 = vld [vmem:[#allocation11] sm:$0xff]
    %v412 = vld [vmem:[#allocation11 + $0x8] sm:$0xff]
    %v413 = vld [vmem:[#allocation11 + $0x10] sm:$0xff]
    %v414 = vld [vmem:[#allocation11 + $0x18] sm:$0xff]
    %v415 = vld [vmem:[#allocation11 + $0x20] sm:$0xff]
    %v416 = vld [vmem:[#allocation11 + $0x28] sm:$0xff]
    %v417 = vld [vmem:[#allocation11 + $0x30] sm:$0xff]
    %v418 = vld [vmem:[#allocation11 + $0x38] sm:$0xff]
    %v419 = vld [vmem:[#allocation11 + $0x40] sm:$0xff]
    %v420 = vld [vmem:[#allocation11 + $0x48] sm:$0xff]
    %v421 = vld [vmem:[#allocation11 + $0x50] sm:$0xff]
    %v422 = vld [vmem:[#allocation11 + $0x58] sm:$0xff]
    %v423 = vld [vmem:[#allocation11 + $0x60] sm:$0xff]
    %v424 = vld [vmem:[#allocation11 + $0x68] sm:$0xff]
    %v425 = vld [vmem:[#allocation11 + $0x70] sm:$0xff]
    %v426 = vld [vmem:[#allocation11 + $0x78] sm:$0xff]
    %v427 = vld [vmem:[%s6] sm:$0x1]
    %v428 = vld [vmem:[#allocation2] sm:$0xff]
    %v429 = vld [vmem:[#allocation2 + $0x8] sm:$0xff]
    %v430 = vld [vmem:[#allocation2 + $0x10] sm:$0xff]
    %v431 = vld [vmem:[#allocation2 + $0x18] sm:$0xff]
    %v432 = vld [vmem:[#allocation2 + $0x20] sm:$0xff]
    %v433 = vld [vmem:[#allocation2 + $0x28] sm:$0xff]
    %v434 = vld [vmem:[#allocation2 + $0x30] sm:$0xff]
    %v435 = vld [vmem:[#allocation2 + $0x38] sm:$0xff]
    %v437 = vperm.slane %v427, 0
    %439 = vmatpush.msra.mxu0 %v410
    %440 = vmatpush.msra.mxu0 %v409
    %441 = vmatpush.msra.mxu0 %v408
    %442 = vmatpush.msra.mxu0 %v407
    %443 = vmatpush.msra.mxu0 %v406
    %444 = vmatpush.msra.mxu0 %v405
    %445 = vmatpush.msra.mxu0 %v404
    %446 = vmatpush.msra.mxu0 %v403
    %447 = vmatpush.msra.mxu0 %v402
    %448 = vmatpush.msra.mxu0 %v401
    %449 = vmatpush.msra.mxu0 %v400
    %450 = vmatpush.msra.mxu0 %v399
    %451 = vmatpush.msra.mxu0 %v398
    %452 = vmatpush.msra.mxu0 %v397
    %453 = vmatpush.msra.mxu0 %v396
    %454 = vmatpush.msra.mxu0 %v395
    %455 = vmatmul.f32.gmra.mxu0 %v428
    %v456 = vpop.f32.mrf.mxu0
    %v457 = vadd.f32 %v437, %v456
    %458 = vmatmul.f32.gmra.mxu0 %v429
    %v459 = vpop.f32.mrf.mxu0
    %v460 = vadd.f32 %v437, %v459
    %461 = vmatmul.f32.gmra.mxu0 %v430
    %v462 = vpop.f32.mrf.mxu0
    %v463 = vadd.f32 %v437, %v462
    %464 = vmatmul.f32.gmra.mxu0 %v431
    %v465 = vpop.f32.mrf.mxu0
    %v466 = vadd.f32 %v437, %v465
    %467 = vmatmul.f32.gmra.mxu0 %v432
    %v468 = vpop.f32.mrf.mxu0
    %v469 = vadd.f32 %v437, %v468
    %470 = vmatmul.f32.gmra.mxu0 %v433
    %v471 = vpop.f32.mrf.mxu0
    %v472 = vadd.f32 %v437, %v471
    %473 = vmatmul.f32.gmra.mxu0 %v434
    %v474 = vpop.f32.mrf.mxu0
    %v475 = vadd.f32 %v437, %v474
    %476 = vmatmul.f32.gmra.mxu0 %v435
    %v477 = vpop.f32.mrf.mxu0
    %v478 = vadd.f32 %v437, %v477
    %479 = vdwg.mxu0
    %480 = vst [vmem:[#allocation2] sm:$0xff] %v457
    %481 = vst [vmem:[#allocation2 + $0x8] sm:$0xff] %v460
    %482 = vst [vmem:[#allocation2 + $0x10] sm:$0xff] %v463
    %483 = vst [vmem:[#allocation2 + $0x18] sm:$0xff] %v466
    %484 = vst [vmem:[#allocation2 + $0x20] sm:$0xff] %v469
    %485 = vst [vmem:[#allocation2 + $0x28] sm:$0xff] %v472
    %486 = vst [vmem:[#allocation2 + $0x30] sm:$0xff] %v475
    %487 = vst [vmem:[#allocation2 + $0x38] sm:$0xff] %v478
    %v488 = vld [vmem:[#allocation2] sm:$0xff]
    %v489 = vtanh.pop %v488
    %490 = vst [vmem:[#allocation2] sm:$0xff] %v489
    %v491 = vld [vmem:[#allocation2 + $0x8] sm:$0xff]
    %492 = vmatpush.msra.mxu0 %v426
    %493 = vmatpush.msra.mxu0 %v425
    %494 = vmatpush.msra.mxu0 %v424
    %495 = vmatpush.msra.mxu0 %v423
    %496 = vmatpush.msra.mxu0 %v422
    %497 = vmatpush.msra.mxu0 %v421
    %498 = vmatpush.msra.mxu0 %v420
    %499 = vmatpush.msra.mxu0 %v419
    %500 = vmatpush.msra.mxu0 %v418
    %501 = vmatpush.msra.mxu0 %v417
    %502 = vmatpush.msra.mxu0 %v416
    %503 = vmatpush.msra.mxu0 %v415
    %504 = vmatpush.msra.mxu0 %v414
    %505 = vmatpush.msra.mxu0 %v413
    %506 = vmatpush.msra.mxu0 %v412
    %507 = vmatpush.msra.mxu0 %v411
    %508 = vmatmul.f32.gmra.mxu0 %v489
    %v509 = vpop.f32.mrf.mxu0
    %v510 = vadd.f32 0.0, %v509
    %511 = vdwg.mxu0
    %v512 = vadd.f32 %v491, %v510
    %v513 = vtanh.pop %v512
    %514 = vst [vmem:[#allocation2 + $0x8] sm:$0xff] %v513
    %v515 = vld [vmem:[#allocation2 + $0x10] sm:$0xff]
    %516 = vmatpush.msra.mxu0 %v426
    %517 = vmatpush.msra.mxu0 %v425
    %518 = vmatpush.msra.mxu0 %v424
    %519 = vmatpush.msra.mxu0 %v423
    %520 = vmatpush.msra.mxu0 %v422
    %521 = vmatpush.msra.mxu0 %v421
    %522 = vmatpush.msra.mxu0 %v420
    %523 = vmatpush.msra.mxu0 %v419
    %524 = vmatpush.msra.mxu0 %v418
    %525 = vmatpush.msra.mxu0 %v417
    %526 = vmatpush.msra.mxu0 %v416
    %527 = vmatpush.msra.mxu0 %v415
    %528 = vmatpush.msra.mxu0 %v414
    %529 = vmatpush.msra.mxu0 %v413
    %530 = vmatpush.msra.mxu0 %v412
    %531 = vmatpush.msra.mxu0 %v411
    %532 = vmatmul.f32.gmra.mxu0 %v513
    %v533 = vpop.f32.mrf.mxu0
    %v534 = vadd.f32 0.0, %v533
    %535 = vdwg.mxu0
    %v536 = vadd.f32 %v515, %v534
    %v537 = vtanh.pop %v536
    %538 = vst [vmem:[#allocation2 + $0x10] sm:$0xff] %v537
    %v539 = vld [vmem:[#allocation2 + $0x18] sm:$0xff]
    %540 = vmatpush.msra.mxu0 %v426
    %541 = vmatpush.msra.mxu0 %v425
    %542 = vmatpush.msra.mxu0 %v424
    %543 = vmatpush.msra.mxu0 %v423
    %544 = vmatpush.msra.mxu0 %v422
    %545 = vmatpush.msra.mxu0 %v421
    %546 = vmatpush.msra.mxu0 %v420
    %547 = vmatpush.msra.mxu0 %v419
    %548 = vmatpush.msra.mxu0 %v418
    %549 = vmatpush.msra.mxu0 %v417
    %550 = vmatpush.msra.mxu0 %v416
    %551 = vmatpush.msra.mxu0 %v415
    %552 = vmatpush.msra.mxu0 %v414
    %553 = vmatpush.msra.mxu0 %v413
    %554 = vmatpush.msra.mxu0 %v412
    %555 = vmatpush.msra.mxu0 %v411
    %556 = vmatmul.f32.gmra.mxu0 %v537
    %v557 = vpop.f32.mrf.mxu0
    %v558 = vadd.f32 0.0, %v557
    %559 = vdwg.mxu0
    %v560 = vadd.f32 %v539, %v558
    %v561 = vtanh.pop %v560
    %562 = vst [vmem:[#allocation2 + $0x18] sm:$0xff] %v561
    %v563 = vld [vmem:[#allocation2 + $0x20] sm:$0xff]
    %564 = vmatpush.msra.mxu0 %v426
    %565 = vmatpush.msra.mxu0 %v425
    %566 = vmatpush.msra.mxu0 %v424
    %567 = vmatpush.msra.mxu0 %v423
    %568 = vmatpush.msra.mxu0 %v422
    %569 = vmatpush.msra.mxu0 %v421
    %570 = vmatpush.msra.mxu0 %v420
    %571 = vmatpush.msra.mxu0 %v419
    %572 = vmatpush.msra.mxu0 %v418
    %573 = vmatpush.msra.mxu0 %v417
    %574 = vmatpush.msra.mxu0 %v416
    %575 = vmatpush.msra.mxu0 %v415
    %576 = vmatpush.msra.mxu0 %v414
    %577 = vmatpush.msra.mxu0 %v413
    %578 = vmatpush.msra.mxu0 %v412
    %579 = vmatpush.msra.mxu0 %v411
    %580 = vmatmul.f32.gmra.mxu0 %v561
    %v581 = vpop.f32.mrf.mxu0
    %v582 = vadd.f32 0.0, %v581
    %583 = vdwg.mxu0
    %v584 = vadd.f32 %v563, %v582
    %v585 = vtanh.pop %v584
    %586 = vst [vmem:[#allocation2 + $0x20] sm:$0xff] %v585
    %v587 = vld [vmem:[#allocation2 + $0x28] sm:$0xff]
    %588 = vmatpush.msra.mxu0 %v426
    %589 = vmatpush.msra.mxu0 %v425
    %590 = vmatpush.msra.mxu0 %v424
    %591 = vmatpush.msra.mxu0 %v423
    %592 = vmatpush.msra.mxu0 %v422
    %593 = vmatpush.msra.mxu0 %v421
    %594 = vmatpush.msra.mxu0 %v420
    %595 = vmatpush.msra.mxu0 %v419
    %596 = vmatpush.msra.mxu0 %v418
    %597 = vmatpush.msra.mxu0 %v417
    %598 = vmatpush.msra.mxu0 %v416
    %599 = vmatpush.msra.mxu0 %v415
    %600 = vmatpush.msra.mxu0 %v414
    %601 = vmatpush.msra.mxu0 %v413
    %602 = vmatpush.msra.mxu0 %v412
    %603 = vmatpush.msra.mxu0 %v411
    %604 = vmatmul.f32.gmra.mxu0 %v585
    %v605 = vpop.f32.mrf.mxu0
    %v606 = vadd.f32 0.0, %v605
    %607 = vdwg.mxu0
    %v608 = vadd.f32 %v587, %v606
    %v609 = vtanh.pop %v608
    %610 = vst [vmem:[#allocation2 + $0x28] sm:$0xff] %v609
    %v611 = vld [vmem:[#allocation2 + $0x30] sm:$0xff]
    %612 = vmatpush.msra.mxu0 %v426
    %613 = vmatpush.msra.mxu0 %v425
    %614 = vmatpush.msra.mxu0 %v424
    %615 = vmatpush.msra.mxu0 %v423
    %616 = vmatpush.msra.mxu0 %v422
    %617 = vmatpush.msra.mxu0 %v421
    %618 = vmatpush.msra.mxu0 %v420
    %619 = vmatpush.msra.mxu0 %v419
    %620 = vmatpush.msra.mxu0 %v418
    %621 = vmatpush.msra.mxu0 %v417
    %622 = vmatpush.msra.mxu0 %v416
    %623 = vmatpush.msra.mxu0 %v415
    %624 = vmatpush.msra.mxu0 %v414
    %625 = vmatpush.msra.mxu0 %v413
    %626 = vmatpush.msra.mxu0 %v412
    %627 = vmatpush.msra.mxu0 %v411
    %628 = vmatmul.f32.gmra.mxu0 %v609
    %v629 = vpop.f32.mrf.mxu0
    %v630 = vadd.f32 0.0, %v629
    %631 = vdwg.mxu0
    %v632 = vadd.f32 %v611, %v630
    %v633 = vtanh.pop %v632
    %634 = vst [vmem:[#allocation2 + $0x30] sm:$0xff] %v633
    %v635 = vld [vmem:[#allocation2 + $0x38] sm:$0xff]
    %636 = vmatpush.msra.mxu0 %v426
    %637 = vmatpush.msra.mxu0 %v425
    %638 = vmatpush.msra.mxu0 %v424
    %639 = vmatpush.msra.mxu0 %v423
    %640 = vmatpush.msra.mxu0 %v422
    %641 = vmatpush.msra.mxu0 %v421
    %642 = vmatpush.msra.mxu0 %v420
    %643 = vmatpush.msra.mxu0 %v419
    %644 = vmatpush.msra.mxu0 %v418
    %645 = vmatpush.msra.mxu0 %v417
    %646 = vmatpush.msra.mxu0 %v416
    %647 = vmatpush.msra.mxu0 %v415
    %648 = vmatpush.msra.mxu0 %v414
    %649 = vmatpush.msra.mxu0 %v413
    %650 = vmatpush.msra.mxu0 %v412
    %651 = vmatpush.msra.mxu0 %v411
    %652 = vmatmul.f32.gmra.mxu0 %v633
    %v653 = vpop.f32.mrf.mxu0
    %v654 = vadd.f32 0.0, %v653
    %655 = vdwg.mxu0
    %v656 = vadd.f32 %v635, %v654
    %v657 = vtanh.pop %v656
    %658 = vst [vmem:[#allocation2 + $0x38] sm:$0xff] %v657
    %659 = vst [vmem:[#allocation15 + $0x8] sm:$0xff] %v657
    %v660 = vld [vmem:[#allocation2] sm:$0xff]
    %v661 = vld [vmem:[#allocation2 + $0x8] sm:$0xff]
    %v662 = vld [vmem:[#allocation2 + $0x10] sm:$0xff]
    %v663 = vld [vmem:[#allocation2 + $0x18] sm:$0xff]
    %v664 = vld [vmem:[#allocation2 + $0x20] sm:$0xff]
    %v665 = vld [vmem:[#allocation2 + $0x28] sm:$0xff]
    %v666 = vld [vmem:[#allocation2 + $0x30] sm:$0xff]
    %v667 = vld [vmem:[#allocation2 + $0x38] sm:$0xff]
    %v668 = vld [vmem:[#allocation12] sm:$0xff]
    %v669 = vld [vmem:[#allocation12 + $0x8] sm:$0xff]
    %v670 = vld [vmem:[#allocation12 + $0x10] sm:$0xff]
    %v671 = vld [vmem:[#allocation12 + $0x18] sm:$0xff]
    %v672 = vld [vmem:[#allocation12 + $0x20] sm:$0xff]
    %v673 = vld [vmem:[#allocation12 + $0x28] sm:$0xff]
    %v674 = vld [vmem:[#allocation12 + $0x30] sm:$0xff]
    %v675 = vld [vmem:[#allocation12 + $0x38] sm:$0xff]
    %v676 = vld [vmem:[#allocation12 + $0x40] sm:$0xff]
    %v677 = vld [vmem:[#allocation12 + $0x48] sm:$0xff]
    %v678 = vld [vmem:[#allocation12 + $0x50] sm:$0xff]
    %v679 = vld [vmem:[#allocation12 + $0x58] sm:$0xff]
    %v680 = vld [vmem:[#allocation12 + $0x60] sm:$0xff]
    %v681 = vld [vmem:[#allocation12 + $0x68] sm:$0xff]
    %v682 = vld [vmem:[#allocation12 + $0x70] sm:$0xff]
    %v683 = vld [vmem:[#allocation12 + $0x78] sm:$0xff]
    %v684 = vld [vmem:[%s8] sm:$0x1]
    %v686 = vperm.slane %v684, 0
    %688 = vmatpush.msra.mxu0 %v683
    %689 = vmatpush.msra.mxu0 %v682
    %690 = vmatpush.msra.mxu0 %v681
    %691 = vmatpush.msra.mxu0 %v680
    %692 = vmatpush.msra.mxu0 %v679
    %693 = vmatpush.msra.mxu0 %v678
    %694 = vmatpush.msra.mxu0 %v677
    %695 = vmatpush.msra.mxu0 %v676
    %696 = vmatpush.msra.mxu0 %v675
    %697 = vmatpush.msra.mxu0 %v674
    %698 = vmatpush.msra.mxu0 %v673
    %699 = vmatpush.msra.mxu0 %v672
    %700 = vmatpush.msra.mxu0 %v671
    %701 = vmatpush.msra.mxu0 %v670
    %702 = vmatpush.msra.mxu0 %v669
    %703 = vmatpush.msra.mxu0 %v668
    %704 = vmatmul.f32.gmra.mxu0 %v660
    %v705 = vpop.f32.mrf.mxu0
    %v706 = vadd.f32 %v686, %v705
    %707 = vmatmul.f32.gmra.mxu0 %v661
    %v708 = vpop.f32.mrf.mxu0
    %v709 = vadd.f32 %v686, %v708
    %710 = vmatmul.f32.gmra.mxu0 %v662
    %v711 = vpop.f32.mrf.mxu0
    %v712 = vadd.f32 %v686, %v711
    %713 = vmatmul.f32.gmra.mxu0 %v663
    %v714 = vpop.f32.mrf.mxu0
    %v715 = vadd.f32 %v686, %v714
    %716 = vmatmul.f32.gmra.mxu0 %v664
    %v717 = vpop.f32.mrf.mxu0
    %v718 = vadd.f32 %v686, %v717
    %719 = vmatmul.f32.gmra.mxu0 %v665
    %v720 = vpop.f32.mrf.mxu0
    %v721 = vadd.f32 %v686, %v720
    %722 = vmatmul.f32.gmra.mxu0 %v666
    %v723 = vpop.f32.mrf.mxu0
    %v724 = vadd.f32 %v686, %v723
    %725 = vmatmul.f32.gmra.mxu0 %v667
    %v726 = vpop.f32.mrf.mxu0
    %v727 = vadd.f32 %v686, %v726
    %728 = vdwg.mxu0
    %v729 = vtanh.pop %v706
    %v730 = vtanh.pop %v709
    %v731 = vtanh.pop %v712
    %v732 = vtanh.pop %v715
    %v733 = vtanh.pop %v718
    %v734 = vtanh.pop %v721
    %v735 = vtanh.pop %v724
    %v736 = vtanh.pop %v727
    %737 = vst [vmem:[#allocation14] sm:$0xff] %v729
    %738 = vst [vmem:[#allocation14 + $0x8] sm:$0xff] %v730
    %739 = vst [vmem:[#allocation14 + $0x10] sm:$0xff] %v731
    %740 = vst [vmem:[#allocation14 + $0x18] sm:$0xff] %v732
    %741 = vst [vmem:[#allocation14 + $0x20] sm:$0xff] %v733
    %742 = vst [vmem:[#allocation14 + $0x28] sm:$0xff] %v734
    %743 = vst [vmem:[#allocation14 + $0x30] sm:$0xff] %v735
    %744 = vst [vmem:[#allocation14 + $0x38] sm:$0xff] %v736
    // Predicated region
    $region62: #{tpu_custom_call.1} parent=1 // pred_check
      _
    $region63: #{tpu_custom_call.1} parent=1 // pred_check_branch
      %746 = sbr.rel (0) target = $region65
    $region64: #{tpu_custom_call.1} parent=1 // pred_region
      %748 = vsyncadd [#allocation5], 0
      %s749 = sshll.u32 [#allocation14], 4
      %s750 = int_to_ptr.vmem [resolvable:$true] %s749
      %s751 = sshll.u32 %s9, 4
      %s752 = int_to_ptr.hbm [resolvable:$true] %s751
      %757 = dma.vmem_to_hbm [thread:$0]  %s750, 1024, %s752, [#allocation5], 128, 128, 8
    $region65: #{tpu_custom_call.1} parent=1 // pred_fallthru
      _
    // Predicated region
    $region66: #{tpu_custom_call.1} parent=1 // pred_check
      _
    $region67: #{tpu_custom_call.1} parent=1 // pred_check_branch
      %759 = sbr.rel (0) target = $region69
    $region68: #{tpu_custom_call.1} parent=1 // pred_region
      %761 = vsyncadd [#allocation16], 0
      %s762 = sshll.u32 [#allocation15], 4
      %s763 = int_to_ptr.vmem [resolvable:$true] %s762
      %s764 = sshll.u32 %s10, 4
      %s765 = int_to_ptr.hbm [resolvable:$true] %s764
      %770 = dma.vmem_to_hbm [thread:$0]  %s763, 256, %s765, [#allocation16], 128, 128, 8
    $region69: #{tpu_custom_call.1} parent=1 // pred_fallthru
      _
    // Predicated region
    $region70: #{tpu_custom_call.1} parent=1 // pred_check
      _
    $region71: #{tpu_custom_call.1} parent=1 // pred_check_branch
      %772 = sbr.rel (0) target = $region73
    $region72: #{tpu_custom_call.1} parent=1 // pred_region
      %774 = dma.done [#allocation5], 1024
    $region73: #{tpu_custom_call.1} parent=1 // pred_fallthru
      _
    // Predicated region
    $region74: #{tpu_custom_call.1} parent=1 // pred_check
      _
    $region75: #{tpu_custom_call.1} parent=1 // pred_check_branch
      %776 = sbr.rel (0) target = $region77
    $region76: #{tpu_custom_call.1} parent=1 // pred_region
      %778 = dma.done [#allocation16], 256
    $region77: #{tpu_custom_call.1} parent=1 // pred_fallthru
      _
    %779 = vsyncpa [#allocation4], 1
    %780 = vsyncpa [#allocation7], 1
    %781 = vsyncpa [#allocation10], 1
    %782 = vsyncpa [#allocation13], 1
    %783 = vsyncpa [#allocation5], 1
    %784 = vsyncpa [#allocation16], 1

</llo_original>
